<compile_context>
chip_gen: v7x
topology: tpu7x:2x2x1
jax: 0.10.0
libtpu: 0.0.40
codegen_flags: <defaults>
</compile_context>

<pallas_src>
import functools
import math

import jax
import jax.numpy as jnp
from jax.experimental import pallas as pl
from jax.experimental.pallas import tpu as pltpu

MASK_VALUE = -1000000000.0


# ---------------------------------------------------------------------------
# Kernel bodies
# ---------------------------------------------------------------------------
def _attn_single_step(q_ref, kv_ref, mask_ref, o_ref):
    """Single-k-tile fast path: whole key sequence visible in one step."""
    q = q_ref[...]                                   # (Bt, tq, D) native dtype
    kv = kv_ref[...]                                 # (Bt, Lk, D) native dtype

    d_k = q.shape[-1]
    scale = 1.0 / math.sqrt(d_k)
    qs = q * jnp.asarray(scale, dtype=q.dtype)       # fold scale into Q once

    s = jnp.einsum("bqd,bkd->bqk", qs, kv,
                   preferred_element_type=jnp.float32)        # (Bt, tq, Lk) f32
    if mask_ref is not None:
        s = jnp.where(mask_ref[...] != 0, jnp.float32(MASK_VALUE), s)

    m = jnp.max(s, axis=-1, keepdims=True)
    p = jnp.exp(s - m)
    l = jnp.sum(p, axis=-1, keepdims=True)
    ctx = jnp.einsum("bqk,bkd->bqd", p.astype(kv.dtype), kv,
                     preferred_element_type=jnp.float32)
    o_ref[...] = (ctx / l).astype(o_ref.dtype)


def _attn_flash_step(q_ref, kv_ref, mask_ref, o_ref,
                     qs_sc, m_sc, l_sc, acc_sc):
    """One (batch-block, q-tile, k-tile) step of online-softmax attention."""
    ki = pl.program_id(2)
    nk = pl.num_programs(2)

    d_k = q_ref.shape[-1]
    scale = 1.0 / math.sqrt(d_k)

    @pl.when(ki == 0)
    def _init():
        # Cache 1/sqrt(d_k)-scaled Q once per q-tile; reused for all k-tiles.
        qs_sc[...] = q_ref[...] * jnp.asarray(scale, dtype=qs_sc.dtype)
        m_sc[...] = jnp.full(m_sc.shape, -jnp.inf, dtype=m_sc.dtype)
        l_sc[...] = jnp.zeros(l_sc.shape, dtype=l_sc.dtype)
        acc_sc[...] = jnp.zeros(acc_sc.shape, dtype=acc_sc.dtype)

    qs = qs_sc[...]                                  # (Bt, tq, D) native dtype
    kv = kv_ref[...]                                 # (Bt, tk, D) native dtype

    # Scores: MXU matmul, contraction on the last dim of both operands
    # (no transposed copy of K), f32 accumulation.
    s = jnp.einsum("bqd,bkd->bqk", qs, kv,
                   preferred_element_type=jnp.float32)        # (Bt, tq, tk) f32
    if mask_ref is not None:
        # Exact masked_fill semantics (fully-masked rows -> uniform softmax).
        s = jnp.where(mask_ref[...] != 0, jnp.float32(MASK_VALUE), s)

    # Online softmax update.
    m_prev = m_sc[...]
    m_new = jnp.maximum(m_prev, jnp.max(s, axis=-1, keepdims=True))
    alpha = jnp.exp(m_prev - m_new)
    p = jnp.exp(s - m_new)                                    # (Bt, tq, tk) f32
    l_sc[...] = alpha * l_sc[...] + jnp.sum(p, axis=-1, keepdims=True)
    acc_sc[...] = alpha * acc_sc[...] + jnp.einsum(
        "bqk,bkd->bqd", p.astype(kv.dtype), kv,
        preferred_element_type=jnp.float32)
    m_sc[...] = m_new

    @pl.when(ki == nk - 1)
    def _finalize():
        # Exact division: runs once per q-tile, negligible cost, keeps f32
        # outputs close to the framework reference.
        o_ref[...] = (acc_sc[...] / l_sc[...]).astype(o_ref.dtype)


def _kernel_single_masked(q_ref, kv_ref, mask_ref, o_ref):
    _attn_single_step(q_ref, kv_ref, mask_ref, o_ref)


def _kernel_single_nomask(q_ref, kv_ref, o_ref):
    _attn_single_step(q_ref, kv_ref, None, o_ref)


def _kernel_flash_masked(q_ref, kv_ref, mask_ref, o_ref,
                         qs_sc, m_sc, l_sc, acc_sc):
    _attn_flash_step(q_ref, kv_ref, mask_ref, o_ref, qs_sc, m_sc, l_sc, acc_sc)


def _kernel_flash_nomask(q_ref, kv_ref, o_ref,
                         qs_sc, m_sc, l_sc, acc_sc):
    _attn_flash_step(q_ref, kv_ref, None, o_ref, qs_sc, m_sc, l_sc, acc_sc)


# ---------------------------------------------------------------------------
# Tiling heuristics
# ---------------------------------------------------------------------------
def _sublane_quantum(itemsize, has_mask):
    """Dtype-aware sublane packing for the q-tile (f32:8, bf16:16, int8:32)."""
    q = max(8, 32 // max(itemsize, 1))
    if has_mask:                      # int8 mask packs 32 rows per sublane grp
        q = max(q, 32)
    return q


def _pick_tile(length, target, quantum):
    """Largest tile <= target that is a multiple of `quantum` and divides
    `length`; fall back to the full extent (always a legal block shape)."""
    if length <= target:
        return length
    t = (target // quantum) * quantum
    while t >= quantum:
        if length % t == 0:
            return t
        t -= quantum
    return length


def _vmem_bytes(bt, tq, tk, d, itemsize, has_mask, multi_k):
    """Working-set estimate including the f32 score/prob temporaries."""
    # Double-buffered Q, K/V, O tiles.
    io = 2 * bt * (tq * d + tk * d + tq * d) * itemsize
    if has_mask:
        io += 2 * bt * tq * tk                      # int8 mask tiles
    # f32 score + probability temporaries materialized in VMEM by Mosaic.
    tmp = 2 * bt * tq * tk * 4
    scratch = 0
    if multi_k:
        scratch += bt * tq * (d + 2) * 4            # m / l / acc (f32)
        scratch += bt * tq * d * itemsize           # cached scaled Q
    return io + tmp + scratch


def _pick_batch_block(B, n_q_tiles, tq, tk, d, itemsize, has_mask, multi_k,
                      budget):
    fits = [c for c in range(B, 0, -1)
            if B % c == 0
            and _vmem_bytes(c, tq, tk, d, itemsize, has_mask, multi_k) <= budget]
    if not fits:
        return 1
    # Prefer the largest fusion that leaves an even number (>= 2) of parallel
    # grid steps (balances the two v7x TensorCores), then any >= 2, then max.
    for c in fits:
        steps = (B // c) * n_q_tiles
        if steps >= 2 and steps % 2 == 0:
            return c
    for c in fits:
        if (B // c) * n_q_tiles >= 2:
            return c
    return fits[0]


def _vmem_budgets():
    """(working-set budget, vmem_limit_bytes) — generation aware."""
    cap = None
    try:
        cap = pltpu.get_tpu_info().vmem_capacity_bytes
    except Exception:
        cap = None
    if cap is not None and cap <= 64 * 1024 * 1024:
        # v7x: 64 MiB VMEM per TensorCore — keep headroom for double-buffering.
        return 20 * 1024 * 1024, 48 * 1024 * 1024
    # v5e / v6e: 128 MiB VMEM — larger resident tiles amortize per-step cost.
    return 48 * 1024 * 1024, 96 * 1024 * 1024


# ---------------------------------------------------------------------------
# pallas_call wrapper
# ---------------------------------------------------------------------------
@functools.partial(jax.jit, static_argnames=("has_mask",))
def _sdpa_call(x, Q, attn_mask, has_mask):
    B, Lk, D = x.shape
    _, Lq, _ = Q.shape
    itemsize = jnp.dtype(Q.dtype).itemsize

    budget, vmem_limit = _vmem_budgets()

    tq = _pick_tile(Lq, 256, _sublane_quantum(itemsize, has_mask))
    tk_target = 512 if budget >= 48 * 1024 * 1024 else 256
    tk = _pick_tile(Lk, tk_target, 128)

    n_q = Lq // tq
    n_k = Lk // tk
    multi_k = n_k > 1
    bt = _pick_batch_block(B, n_q, tq, tk, D, itemsize, has_mask, multi_k,
                           budget)

    out_shape = jax.ShapeDtypeStruct((B, Lq, D), Q.dtype)
    mask_bytes = B * Lq * Lk if has_mask else 0
    cost = pl.CostEstimate(
        flops=4 * B * Lq * Lk * D,
        transcendentals=B * Lq * Lk,
        bytes_accessed=(B * Lq * D + B * Lk * D + B * Lq * D) * itemsize
                       + mask_bytes)

    if multi_k:
        # Flash path: online softmax, reduction axis (k) last / "arbitrary".
        grid = (B // bt, n_q, n_k)
        q_spec = pl.BlockSpec((bt, tq, D), lambda b, qi, ki: (b, qi, 0))
        kv_spec = pl.BlockSpec((bt, tk, D), lambda b, qi, ki: (b, ki, 0))
        o_spec = pl.BlockSpec((bt, tq, D), lambda b, qi, ki: (b, qi, 0))
        scratch = [pltpu.VMEM((bt, tq, D), Q.dtype),       # scaled-Q cache
                   pltpu.VMEM((bt, tq, 1), jnp.float32),   # running max m
                   pltpu.VMEM((bt, tq, 1), jnp.float32),   # running denom l
                   pltpu.VMEM((bt, tq, D), jnp.float32)]   # unnormalized acc
        cparams = pltpu.CompilerParams(
            dimension_semantics=("parallel", "parallel", "arbitrary"),
            vmem_limit_bytes=vmem_limit)
        in_specs = [q_spec, kv_spec]
        args = (Q, x)
        kernel = _kernel_flash_nomask
        if has_mask:
            in_specs = in_specs + [
                pl.BlockSpec((bt, tq, tk), lambda b, qi, ki: (b, qi, ki))]
            args = (Q, x, attn_mask)
            kernel = _kernel_flash_masked
        return pl.pallas_call(
            kernel,
            out_shape=out_shape,
            grid_spec=pltpu.PrefetchScalarGridSpec(
                num_scalar_prefetch=0,
                grid=grid,
                in_specs=in_specs,
                out_specs=o_spec,
                scratch_shapes=scratch),
            compiler_params=cparams,
            cost_estimate=cost,
        )(*args)

    # Single-k-tile fast path: no scratch machinery, 2-D fully-parallel grid.
    grid = (B // bt, n_q)
    q_spec = pl.BlockSpec((bt, tq, D), lambda b, qi: (b, qi, 0))
    kv_spec = pl.BlockSpec((bt, tk, D), lambda b, qi: (b, 0, 0))
    o_spec = pl.BlockSpec((bt, tq, D), lambda b, qi: (b, qi, 0))
    cparams = pltpu.CompilerParams(
        dimension_semantics=("parallel", "parallel"),
        vmem_limit_bytes=vmem_limit)
    in_specs = [q_spec, kv_spec]
    args = (Q, x)
    kernel = _kernel_single_nomask
    if has_mask:
        in_specs = in_specs + [
            pl.BlockSpec((bt, tq, tk), lambda b, qi: (b, qi, 0))]
        args = (Q, x, attn_mask)
        kernel = _kernel_single_masked
    return pl.pallas_call(
        kernel,
        out_shape=out_shape,
        grid_spec=pltpu.PrefetchScalarGridSpec(
            num_scalar_prefetch=0,
            grid=grid,
            in_specs=in_specs,
            out_specs=o_spec),
        compiler_params=cparams,
        cost_estimate=cost,
    )(*args)


def scaled_dot_product_attention(x, Q, attn_mask=None):
    """Pallas port of ScaledDotProductAttention.forward.

    x: [B, Lk, D]   (used as both K and V)
    Q: [B, Lq, D]
    attn_mask: optional [B, Lq, Lk]; nonzero/True => masked
    returns context: [B, Lq, D]
    """
    if attn_mask is not None:
        return _sdpa_call(x, Q, attn_mask.astype(jnp.int8), True)
    dummy = jnp.zeros((0,), jnp.int8)
    return _sdpa_call(x, Q, dummy, False)


# ---------------------------------------------------------------------------
# Reference + self-test
# ---------------------------------------------------------------------------
def _reference(x, Q, attn_mask=None):
    d_k = Q.shape[-1]
    scores = jnp.einsum("bqd,bkd->bqk", Q.astype(jnp.float32),
                        x.astype(jnp.float32)) / jnp.sqrt(jnp.float32(d_k))
    if attn_mask is not None:
        scores = jnp.where(attn_mask, jnp.float32(MASK_VALUE), scores)
    attn = jax.nn.softmax(scores, axis=-1)
    return jnp.einsum("bqk,bkd->bqd", attn, x.astype(jnp.float32))


if __name__ == "__main__":
    key = jax.random.PRNGKey(0)
    keys = jax.random.split(key, 9)

    # Case 1: tiny shapes (single k-tile fast path), masked + unmasked.
    B, Lq, Lk, D = 2, 8, 16, 32
    x = jax.random.normal(keys[0], (B, Lk, D), dtype=jnp.float32)
    Q = jax.random.normal(keys[1], (B, Lq, D), dtype=jnp.float32)
    attn_mask = jax.random.bernoulli(keys[2], p=0.25, shape=(B, Lq, Lk))

    out_masked = scaled_dot_product_attention(x, Q, attn_mask)
    jax.block_until_ready(out_masked)
    ref_masked = _reference(x, Q, attn_mask)
    assert out_masked.shape == (B, Lq, D)
    assert jnp.allclose(out_masked, ref_masked, atol=2e-3, rtol=2e-3)

    out_plain = scaled_dot_product_attention(x, Q, None)
    jax.block_until_ready(out_plain)
    ref_plain = _reference(x, Q, None)
    assert jnp.allclose(out_plain, ref_plain, atol=2e-3, rtol=2e-3)

    # Case 2: medium key sequence (may take fast or tiled path by generation).
    B2, Lq2, Lk2, D2 = 2, 16, 384, 32
    x2 = jax.random.normal(keys[3], (B2, Lk2, D2), dtype=jnp.float32)
    Q2 = jax.random.normal(keys[4], (B2, Lq2, D2), dtype=jnp.float32)
    mask2 = jax.random.bernoulli(keys[5], p=0.25, shape=(B2, Lq2, Lk2))

    out2 = scaled_dot_product_attention(x2, Q2, mask2)
    jax.block_until_ready(out2)
    ref2 = _reference(x2, Q2, mask2)
    assert out2.shape == (B2, Lq2, D2)
    assert jnp.allclose(out2, ref2, atol=2e-3, rtol=2e-3)

    # Case 3: long key sequence -> always exercises the tiled online-softmax
    # (flash) path on every generation, masked + unmasked.
    B3, Lq3, Lk3, D3 = 2, 16, 1536, 32
    x3 = jax.random.normal(keys[6], (B3, Lk3, D3), dtype=jnp.float32)
    Q3 = jax.random.normal(keys[7], (B3, Lq3, D3), dtype=jnp.float32)
    mask3 = jax.random.bernoulli(keys[8], p=0.25, shape=(B3, Lq3, Lk3))

    out3 = scaled_dot_product_attention(x3, Q3, mask3)
    jax.block_until_ready(out3)
    ref3 = _reference(x3, Q3, mask3)
    assert out3.shape == (B3, Lq3, D3)
    assert jnp.allclose(out3, ref3, atol=2e-3, rtol=2e-3)

    out3p = scaled_dot_product_attention(x3, Q3, None)
    jax.block_until_ready(out3p)
    ref3p = _reference(x3, Q3, None)
    assert jnp.allclose(out3p, ref3p, atol=2e-3, rtol=2e-3)

    print("KERNEL_OK")
</pallas_src>

<mosaic_0001>
module attributes {stable_mosaic.version = 11 : i64} {
  func.func @_kernel_single_masked(%arg0: i32, %arg1: i32, %arg2: memref<1x8x32xf32, #tpu.memory_space<vmem>>, %arg3: memref<1x16x32xf32, #tpu.memory_space<vmem>>, %arg4: memref<1x8x16xi8, #tpu.memory_space<vmem>>, %arg5: memref<1x8x32xf32, #tpu.memory_space<vmem>>) attributes {dimension_semantics = [#tpu.dimension_semantics<parallel>, #tpu.dimension_semantics<parallel>], iteration_bounds = array<i64: 2, 1>, scalar_prefetch = 0 : i64, scratch_operands = 0 : i64, tpu.core_type = #tpu.core_type<tc>, window_params = [{transform_indices = @transform_0, window_bounds = array<i64: 1, 8, 32>}, {transform_indices = @transform_1, window_bounds = array<i64: 1, 16, 32>}, {transform_indices = @transform_2, window_bounds = array<i64: 1, 8, 16>}, {transform_indices = @transform_3, window_bounds = array<i64: 1, 8, 32>}]} {
    %c0 = arith.constant 0 : index
    %c0_0 = arith.constant 0 : index
    %c0_1 = arith.constant 0 : index
    %0 = vector.load %arg2[%c0, %c0_0, %c0_1] : memref<1x8x32xf32, #tpu.memory_space<vmem>>, vector<1x8x32xf32>
    %c0_2 = arith.constant 0 : index
    %c0_3 = arith.constant 0 : index
    %c0_4 = arith.constant 0 : index
    %1 = vector.load %arg3[%c0_2, %c0_3, %c0_4] : memref<1x16x32xf32, #tpu.memory_space<vmem>>, vector<1x16x32xf32>
    %cst = arith.constant 0.176776692 : f32
    %2 = vector.broadcast %cst : f32 to vector<1x8x32xf32>
    %3 = arith.mulf %0, %2 : vector<1x8x32xf32>
    "tpu.trace_start"() <{level = 10 : i32, message = "bqd,bkd->bqk"}> : () -> ()
    %cst_5 = arith.constant dense<0.000000e+00> : vector<1x8x16xf32>
    %4 = tpu.matmul %3, %1, %cst_5 {dimension_numbers = #tpu.dot_dimension_numbers<[2], [2], [1], [1], [0, 0, 0, 1, 1, 1], [0], [0]>} : vector<1x8x32xf32>, vector<1x16x32xf32>, vector<1x8x16xf32> -> vector<1x8x16xf32>
    "tpu.trace_stop"() : () -> ()
    %c0_6 = arith.constant 0 : index
    %c0_7 = arith.constant 0 : index
    %c0_8 = arith.constant 0 : index
    %5 = vector.load %arg4[%c0_6, %c0_7, %c0_8] : memref<1x8x16xi8, #tpu.memory_space<vmem>>, vector<1x8x16xi8>
    %c0_i8 = arith.constant 0 : i8
    %6 = vector.broadcast %c0_i8 : i8 to vector<1x8x16xi8>
    %7 = arith.cmpi ne, %5, %6 : vector<1x8x16xi8>
    %cst_9 = arith.constant -1.000000e+09 : f32
    %8 = vector.broadcast %cst_9 : f32 to vector<1x8x16xf32>
    %9 = arith.select %7, %8, %4 : vector<1x8x16xi1>, vector<1x8x16xf32>
    %cst_10 = arith.constant dense<0xFF800000> : vector<1x8xf32>
    %10 = vector.multi_reduction <maximumf>, %9, %cst_10 [2] : vector<1x8x16xf32> to vector<1x8xf32>
    %11 = vector.shape_cast %10 : vector<1x8xf32> to vector<1x8x1xf32>
    %12 = vector.broadcast %11 : vector<1x8x1xf32> to vector<1x8x16xf32>
    %13 = arith.subf %9, %12 : vector<1x8x16xf32>
    %14 = math.exp %13 : vector<1x8x16xf32>
    %cst_11 = arith.constant dense<0.000000e+00> : vector<1x8xf32>
    %15 = vector.multi_reduction <add>, %14, %cst_11 [2] : vector<1x8x16xf32> to vector<1x8xf32>
    %16 = vector.shape_cast %15 : vector<1x8xf32> to vector<1x8x1xf32>
    "tpu.trace_start"() <{level = 10 : i32, message = "bqk,bkd->bqd"}> : () -> ()
    %cst_12 = arith.constant dense<0.000000e+00> : vector<1x8x32xf32>
    %17 = tpu.matmul %14, %1, %cst_12 {dimension_numbers = #tpu.dot_dimension_numbers<[2], [1], [1], [2], [0, 0, 0, 1, 1, 2], [0], [0]>} : vector<1x8x16xf32>, vector<1x16x32xf32>, vector<1x8x32xf32> -> vector<1x8x32xf32>
    "tpu.trace_stop"() : () -> ()
    %18 = vector.broadcast %16 : vector<1x8x1xf32> to vector<1x8x32xf32>
    %19 = arith.divf %17, %18 : vector<1x8x32xf32>
    %c0_13 = arith.constant 0 : index
    %c0_14 = arith.constant 0 : index
    %c0_15 = arith.constant 0 : index
    %20 = vector.load %arg5[%c0_13, %c0_14, %c0_15] : memref<1x8x32xf32, #tpu.memory_space<vmem>>, vector<1x8x32xf32>
    tpu.vector_store %arg5[%c0_13, %c0_14, %c0_15], %19 {strides = array<i32>} : memref<1x8x32xf32, #tpu.memory_space<vmem>>, vector<1x8x32xf32>,
    return
  }
  func.func @transform_0(%arg0: i32, %arg1: i32) -> (i32, i32, i32) {
    %c0_i32 = arith.constant 0 : i32
    %c0_i32_0 = arith.constant 0 : i32
    return %arg0, %arg1, %c0_i32 : i32, i32, i32
  }
  func.func @transform_1(%arg0: i32, %arg1: i32) -> (i32, i32, i32) {
    %c0_i32 = arith.constant 0 : i32
    %c0_i32_0 = arith.constant 0 : i32
    %c0_i32_1 = arith.constant 0 : i32
    return %arg0, %c0_i32, %c0_i32_0 : i32, i32, i32
  }
  func.func @transform_2(%arg0: i32, %arg1: i32) -> (i32, i32, i32) {
    %c0_i32 = arith.constant 0 : i32
    %c0_i32_0 = arith.constant 0 : i32
    return %arg0, %arg1, %c0_i32 : i32, i32, i32
  }
  func.func @transform_3(%arg0: i32, %arg1: i32) -> (i32, i32, i32) {
    %c0_i32 = arith.constant 0 : i32
    %c0_i32_0 = arith.constant 0 : i32
    return %arg0, %arg1, %c0_i32 : i32, i32, i32
  }
}

</mosaic_0001>

<llo_original>
// kernel: _sdpa_call.1
$region0: #{_sdpa_call.1}
  #allocation0 [shape = 'u32[]', space=smem, size = 0x4, offset = 0x4, fixed_abs, tag = 'smem constant byte address 0x4 - core index']
  #allocation1 [shape = 'u32[144,128]{1,0:T(1,128)}', space=vmem, size = 0x12000, scoped, tag = 'internal scratch']
  %s0 = inlined_call_operand.hbm [shape: f32[2,8,32], index: 0, kind: input, shape index: {}]
  %s1 = inlined_call_operand.hbm [shape: f32[2,16,32], index: 1, kind: input, shape index: {}]
  %s2 = inlined_call_operand.hbm [shape: s8[2,8,16], index: 2, kind: input, shape index: {}]
  %s3 = inlined_call_operand.hbm [shape: f32[2,8,32], index: 3, kind: output, shape index: {}]
  %s4 = sld [smem:[#allocation0]]
  $region57: #{_sdpa_call.1} parent=0
    _
  %s6 = ssub.s32 1, %s4
  %s7 = scalar_select 0, %s6, %s4
  $region1: #{_sdpa_call.1} parent=0
    #allocation2 [shape = 'u8[8192]{0}', space=vmem, size = 0x2000, scoped, tag = 'input window, operand 0']
    #allocation3 [shape = 's32[2]{0}', space=sflag, size = 0x8, scoped, tag = 'scoped memory for _sdpa_call.1']
    #allocation4 [shape = 's32[2]{0}', space=sflag, size = 0x8, scoped, tag = 'scoped memory for _sdpa_call.1']
    #allocation5 [shape = 'u8[16384]{0}', space=vmem, size = 0x4000, scoped, tag = 'input window, operand 1']
    #allocation6 [shape = 's32[2]{0}', space=sflag, size = 0x8, scoped, tag = 'scoped memory for _sdpa_call.1']
    #allocation7 [shape = 'u8[2048]{0}', space=vmem, size = 0x800, scoped, tag = 'input window, operand 2']
    #allocation8 [shape = 'u8[8192]{0}', space=vmem, size = 0x2000, scoped, tag = 'output window, operand 0']
    %8 = vsyncpa [#allocation3], 0
    %s9 = scalar_lea.sflag [#allocation3], 1
    %10 = vsyncpa %s9, 0
    %11 = vsyncpa [#allocation6], 0
    %s12 = scalar_lea.sflag [#allocation6], 1
    %13 = vsyncpa %s12, 0
    %14 = vsyncpa [#allocation4], 0
    %s15 = scalar_lea.sflag [#allocation4], 1
    %16 = vsyncpa %s15, 0
    loop: start=0, step=1, limit=4
    $region2: #{_sdpa_call.1} parent=1 // loop_pre_header
      _
    $region3: #{_sdpa_call.1} parent=1 // loop_header
      %s18 = sphi 0, %s22
      %p19 = scmp.ge.s32.totalorder %s18, 4
      %s25 = sphi 0, %s37
      %s26 = sphi 0, %s33
      %s27 = sphi 0, %s25
      %s28 = sphi 0, %s26
      %s29 = sphi 0, %s27
      %s30 = sphi 0, %s28
      %s42 = sphi 0, %s44
      %s45 = sphi 0, %s42
      %s46 = sphi 0, %s45
      %s62 = sphi 0, %s46
      %s68 = sphi 0, %s70
      %s71 = sphi 0, %s68
      %s72 = sphi 0, %s71
      %s88 = sphi 0, %s72
      %s96 = sphi 0, %s98
      %s99 = sphi 0, %s96
      %s100 = sphi 0, %s99
      %s116 = sphi 0, %s100
      %s124 = sphi 0, %s126
      %s127 = sphi 0, %s124
      %s128 = sphi 0, %s127
      %s144 = sphi 0, %s128
    $region4: #{_sdpa_call.1} parent=1 // loop_header_branch
      %21 = sbr.rel (%p19) target = $region8
    $region5: #{_sdpa_call.1} parent=1 // loop_body
      %s23 = ssub.s32 %s18, 1
      %s24 = ssub.s32 %s18, 2
      %s31 = sadd.s32 1, %s26
      %p32 = scmp.ge.s32.totalorder %s31, 1
      %s33 = scalar_select %p32, 0, %s31
      %s34 = sadd.s32 1, %s25
      %s35 = scalar_select %p32, %s34, %s25
      %p36 = scmp.ge.s32.totalorder %s35, 2
      %s37 = scalar_select %p36, 0, %s35
      %s38 = ssub.s32 %s25, %s37
      %s39 = ssub.s32 %s26, %s33
      %s40 = sor.u32 %s38, %s39
      %p41 = scmp.eq.s32.totalorder %s40, 0
      %s43 = sadd.s32 %s42, 1
      %s44 = scalar_select %p41, %s42, %s43
      %p47 = pneg %p41
      %p48 = scmp.eq.s32.totalorder %s18, 1
      %p49 = por %p47, %p48
      %p50 = scmp.ne.s32.totalorder %s42, %s45
      %p51 = scmp.eq.s32.totalorder %s18, 0
      %p52 = por %p50, %p51
      %p53 = scmp.ne.s32.totalorder %s42, %s45
      %p54 = scmp.eq.s32.totalorder %s23, 1
      %p55 = por %p53, %p54
      %p56 = scmp.ne.s32.totalorder %s45, %s46
      %p57 = scmp.eq.s32.totalorder %s23, 0
      %p58 = por %p56, %p57
      %p59 = scmp.ne.s32.totalorder %s45, %s46
      %p60 = scmp.eq.s32.totalorder %s24, 1
      %p61 = por %p59, %p60
      %p63 = scmp.ne.s32.totalorder %s46, %s62
      %p64 = scmp.eq.s32.totalorder %s24, 0
      %p65 = por %p63, %p64
      %s66 = ssub.s32 %s25, %s37
      %p67 = scmp.eq.s32.totalorder %s66, 0
      %s69 = sadd.s32 %s68, 1
      %s70 = scalar_select %p67, %s68, %s69
      %p73 = pneg %p67
      %p74 = scmp.eq.s32.totalorder %s18, 1
      %p75 = por %p73, %p74
      %p76 = scmp.ne.s32.totalorder %s68, %s71
      %p77 = scmp.eq.s32.totalorder %s18, 0
      %p78 = por %p76, %p77
      %p79 = scmp.ne.s32.totalorder %s68, %s71
      %p80 = scmp.eq.s32.totalorder %s23, 1
      %p81 = por %p79, %p80
      %p82 = scmp.ne.s32.totalorder %s71, %s72
      %p83 = scmp.eq.s32.totalorder %s23, 0
      %p84 = por %p82, %p83
      %p85 = scmp.ne.s32.totalorder %s71, %s72
      %p86 = scmp.eq.s32.totalorder %s24, 1
      %p87 = por %p85, %p86
      %p89 = scmp.ne.s32.totalorder %s72, %s88
      %p90 = scmp.eq.s32.totalorder %s24, 0
      %p91 = por %p89, %p90
      %s92 = ssub.s32 %s25, %s37
      %s93 = ssub.s32 %s26, %s33
      %s94 = sor.u32 %s92, %s93
      %p95 = scmp.eq.s32.totalorder %s94, 0
      %s97 = sadd.s32 %s96, 1
      %s98 = scalar_select %p95, %s96, %s97
      %p101 = pneg %p95
      %p102 = scmp.eq.s32.totalorder %s18, 1
      %p103 = por %p101, %p102
      %p104 = scmp.ne.s32.totalorder %s96, %s99
      %p105 = scmp.eq.s32.totalorder %s18, 0
      %p106 = por %p104, %p105
      %p107 = scmp.ne.s32.totalorder %s96, %s99
      %p108 = scmp.eq.s32.totalorder %s23, 1
      %p109 = por %p107, %p108
      %p110 = scmp.ne.s32.totalorder %s99, %s100
      %p111 = scmp.eq.s32.totalorder %s23, 0
      %p112 = por %p110, %p111
      %p113 = scmp.ne.s32.totalorder %s99, %s100
      %p114 = scmp.eq.s32.totalorder %s24, 1
      %p115 = por %p113, %p114
      %p117 = scmp.ne.s32.totalorder %s100, %s116
      %p118 = scmp.eq.s32.totalorder %s24, 0
      %p119 = por %p117, %p118
      %s120 = ssub.s32 %s25, %s37
      %s121 = ssub.s32 %s26, %s33
      %s122 = sor.u32 %s120, %s121
      %p123 = scmp.eq.s32.totalorder %s122, 0
      %s125 = sadd.s32 %s124, 1
      %s126 = scalar_select %p123, %s124, %s125
      %p129 = pneg %p123
      %p130 = scmp.eq.s32.totalorder %s18, 1
      %p131 = por %p129, %p130
      %p132 = scmp.ne.s32.totalorder %s124, %s127
      %p133 = scmp.eq.s32.totalorder %s18, 0
      %p134 = por %p132, %p133
      %p135 = scmp.ne.s32.totalorder %s124, %s127
      %p136 = scmp.eq.s32.totalorder %s23, 1
      %p137 = por %p135, %p136
      %p138 = scmp.ne.s32.totalorder %s127, %s128
      %p139 = scmp.eq.s32.totalorder %s23, 0
      %p140 = por %p138, %p139
      %p141 = scmp.ne.s32.totalorder %s127, %s128
      %p142 = scmp.eq.s32.totalorder %s24, 1
      %p143 = por %p141, %p142
      %p145 = scmp.ne.s32.totalorder %s128, %s144
      %p146 = scmp.eq.s32.totalorder %s24, 0
      %p147 = por %p145, %p146
      %p148 = scmp.le.s32.totalorder 1, %s18
      %p149 = scmp.lt.s32.totalorder %s18, 3
      %p150 = pnand %p148, %p149
      %p151 = pneg %p150
      // Predicated region
      $region9: #{_sdpa_call.1} parent=5 // pred_check
        _
      $region10: #{_sdpa_call.1} parent=5 // pred_check_branch
        %153 = sbr.rel (%p150) target = $region12
      $region11: #{_sdpa_call.1} parent=5 // pred_region
        %s154 = ssub.s32 %s18, 1
      $region12: #{_sdpa_call.1} parent=5 // pred_fallthru
        _
      %p155 = scmp.lt.s32.totalorder %s18, 2
      // Predicated region
      $region13: #{_sdpa_call.1} parent=5 // pred_check
        %p156 = pneg %p155
      $region14: #{_sdpa_call.1} parent=5 // pred_check_branch
        %158 = sbr.rel (%p156) target = $region16
      $region15: #{_sdpa_call.1} parent=5 // pred_region
        // Predicated region
        $region17: #{_sdpa_call.1} parent=15 // pred_check
          %p159 = pneg %p52
        $region18: #{_sdpa_call.1} parent=15 // pred_check_branch
          %161 = sbr.rel (%p159) target = $region20
        $region19: #{_sdpa_call.1} parent=15 // pred_region
          %s162 = sand.u32 %s42, 1
          %s163 = scalar_lea.sflag [#allocation3], %s162
          %s164 = sand.u32 %s42, 1
          %s165 = smul.addr %s164, 8
          %s166 = scalar_lea.vmem [#allocation2], %s165
          %s168 = ssub.s32 128, 128
          %169 = vsyncadd %s163, %s168
          %s170 = sadd.s32 %s26, %s25
          %s171 = smul.addr %s170, 128
          %s172 = scalar_lea.hbm %s0, %s171
          %s174 = sshll.u32 %s166, 4
          %s175 = int_to_ptr.vmem [resolvable:$true] %s174
          %177 = dma.hbm_to_vmem [thread:$0]  %s172, 128, %s175, %s163
        $region20: #{_sdpa_call.1} parent=15 // pred_fallthru
          _
        // Predicated region
        $region21: #{_sdpa_call.1} parent=15 // pred_check
          %p178 = pneg %p78
        $region22: #{_sdpa_call.1} parent=15 // pred_check_branch
          %180 = sbr.rel (%p178) target = $region24
        $region23: #{_sdpa_call.1} parent=15 // pred_region
          %s181 = sand.u32 %s18, 1
          %s182 = scalar_lea.sflag [#allocation6], %s181
          %s183 = sand.u32 %s68, 1
          %s184 = smul.addr %s183, 16
          %s185 = scalar_lea.vmem [#allocation5], %s184
          %s187 = ssub.s32 256, 256
          %188 = vsyncadd %s182, %s187
          %s189 = smul.addr %s25, 2
          %s190 = smul.addr %s189, 128
          %s191 = scalar_lea.hbm %s1, %s190
          %s192 = sshll.u32 %s185, 4
          %s193 = int_to_ptr.vmem [resolvable:$true] %s192
          %198 = dma.hbm_to_vmem [thread:$0]  %s191, 256, %s193, %s182, 128, 128, 8
        $region24: #{_sdpa_call.1} parent=15 // pred_fallthru
          _
        // Predicated region
        $region25: #{_sdpa_call.1} parent=15 // pred_check
          %p199 = pneg %p106
        $region26: #{_sdpa_call.1} parent=15 // pred_check_branch
          %201 = sbr.rel (%p199) target = $region28
        $region27: #{_sdpa_call.1} parent=15 // pred_region
          %s202 = sand.u32 %s18, 1
          %s203 = scalar_lea.sflag [#allocation6], %s202
          %s204 = sand.u32 %s96, 1
          %s205 = smul.addr %s204, 2
          %s206 = scalar_lea.vmem [#allocation7], %s205
          %s208 = ssub.s32 32, 32
          %209 = vsyncadd %s203, %s208
          %s210 = sadd.s32 %s26, %s25
          %s211 = smul.addr %s210, 32
          %s212 = scalar_lea.hbm %s2, %s211
          %s214 = sshll.u32 %s206, 4
          %s215 = int_to_ptr.vmem [resolvable:$true] %s214
          %217 = dma.hbm_to_vmem [thread:$0]  %s212, 32, %s215, %s203
        $region28: #{_sdpa_call.1} parent=15 // pred_fallthru
          _
      $region16: #{_sdpa_call.1} parent=5 // pred_fallthru
        _
      %p218 = scmp.le.s32.totalorder 1, %s18
      %p219 = scmp.lt.s32.totalorder %s18, 3
      %p220 = pnand %p218, %p219
      %p221 = pneg %p220
      // Predicated region
      $region29: #{_sdpa_call.1} parent=5 // pred_check
        _
      $region30: #{_sdpa_call.1} parent=5 // pred_check_branch
        %223 = sbr.rel (%p220) target = $region32
      $region31: #{_sdpa_call.1} parent=5 // pred_region
        %s224 = ssub.s32 %s18, 1
        %s225 = sand.u32 %s45, 1
        %s226 = scalar_lea.sflag [#allocation3], %s225
        %s227 = sand.u32 %s45, 1
        %s228 = smul.addr %s227, 8
        %s229 = scalar_lea.vmem [#allocation2], %s228
        // Predicated region
        $region33: #{_sdpa_call.1} parent=31 // pred_check
          %p230 = pneg %p58
        $region34: #{_sdpa_call.1} parent=31 // pred_check_branch
          %232 = sbr.rel (%p230) target = $region36
        $region35: #{_sdpa_call.1} parent=31 // pred_region
          %233 = dma.done %s226, 128
        $region36: #{_sdpa_call.1} parent=31 // pred_fallthru
          _
        %s234 = sand.u32 %s23, 1
        %s235 = scalar_lea.sflag [#allocation6], %s234
        %s236 = sand.u32 %s71, 1
        %s237 = smul.addr %s236, 16
        %s238 = scalar_lea.vmem [#allocation5], %s237
        // Predicated region
        $region37: #{_sdpa_call.1} parent=31 // pred_check
          %p239 = pneg %p84
        $region38: #{_sdpa_call.1} parent=31 // pred_check_branch
          %241 = sbr.rel (%p239) target = $region40
        $region39: #{_sdpa_call.1} parent=31 // pred_region
          %242 = dma.done %s235, 256
        $region40: #{_sdpa_call.1} parent=31 // pred_fallthru
          _
        %s243 = sand.u32 %s23, 1
        %s244 = scalar_lea.sflag [#allocation6], %s243
        %s245 = sand.u32 %s99, 1
        %s246 = smul.addr %s245, 2
        %s247 = scalar_lea.vmem [#allocation7], %s246
        // Predicated region
        $region41: #{_sdpa_call.1} parent=31 // pred_check
          %p248 = pneg %p112
        $region42: #{_sdpa_call.1} parent=31 // pred_check_branch
          %250 = sbr.rel (%p248) target = $region44
        $region43: #{_sdpa_call.1} parent=31 // pred_region
          %251 = dma.done %s244, 32
        $region44: #{_sdpa_call.1} parent=31 // pred_fallthru
          _
        %s252 = sand.u32 %s45, 1
        %s253 = scalar_lea.sflag [#allocation3], %s252
        %s254 = sand.u32 %s45, 1
        %s255 = smul.addr %s254, 8
        %s256 = scalar_lea.vmem [#allocation2], %s255
        %p257 = pneg %p58
        %p258 = pneg %p55
        %s259 = sand.u32 %s23, 1
        %s260 = scalar_lea.sflag [#allocation6], %s259
        %s261 = sand.u32 %s71, 1
        %s262 = smul.addr %s261, 16
        %s263 = scalar_lea.vmem [#allocation5], %s262
        %p264 = pneg %p84
        %p265 = pneg %p81
        %s266 = sand.u32 %s23, 1
        %s267 = scalar_lea.sflag [#allocation6], %s266
        %s268 = sand.u32 %s99, 1
        %s269 = smul.addr %s268, 2
        %s270 = scalar_lea.vmem [#allocation7], %s269
        %p271 = pneg %p112
        %p272 = pneg %p109
        %p273 = pneg %p140
        %p274 = pneg %p137
        %s275 = sand.u32 %s127, 1
        %s276 = scalar_lea.sflag [#allocation4], %s275
        %s277 = sand.u32 %s127, 1
        %s278 = smul.addr %s277, 8
        %s279 = scalar_lea.vmem [#allocation8], %s278
        %v282 = vld [vmem:[%s229] sm:$0xff]
        %v283 = vld [vmem:[%s238] sm:$0xff]
        %v284 = vld [vmem:[%s238 + $0x8] sm:$0xff]
        %v285 = vmul.f32 %v282, 0.17677669
        %vm286 = vcmask 261120
        %v288 = vsel %vm286, %v285, 0
        %v291 = vsel %vm286, %v283, 0
        %v294 = vsel %vm286, %v284, 0
        %296 = vmatprep.subr.mxu0 0.0
        %297 = vmatpush1.xpose.msra.mxu0 %v291
        %298 = vmatprep.subr.mxu0 0.0
        %299 = vmatpush1.xpose.msra.mxu0 %v294
        %300 = vmatprep.subr.mxu0 0.0
        %301 = vmatpush1.xpose.msra.mxu0 0.0
        %302 = vmatprep.subr.mxu0 0.0
        %303 = vmatpush1.xpose.msra.mxu0 0.0
        %304 = vmatprep.subr.mxu0 0.0
        %305 = vmatpush1.xpose.msra.mxu0 0.0
        %306 = vmatprep.subr.mxu0 0.0
        %307 = vmatpush1.xpose.msra.mxu0 0.0
        %308 = vmatprep.subr.mxu0 0.0
        %309 = vmatpush1.xpose.msra.mxu0 0.0
        %310 = vmatprep.subr.mxu0 0.0
        %311 = vmatpush1.xpose.msra.mxu0 0.0
        %312 = vmatprep.subr.mxu0 0.0
        %313 = vmatpush1.xpose.msra.mxu0 0.0
        %314 = vmatprep.subr.mxu0 0.0
        %315 = vmatpush1.xpose.msra.mxu0 0.0
        %316 = vmatprep.subr.mxu0 0.0
        %317 = vmatpush1.xpose.msra.mxu0 0.0
        %318 = vmatprep.subr.mxu0 0.0
        %319 = vmatpush1.xpose.msra.mxu0 0.0
        %320 = vmatprep.subr.mxu0 0.0
        %321 = vmatpush1.xpose.msra.mxu0 0.0
        %322 = vmatprep.subr.mxu0 0.0
        %323 = vmatpush1.xpose.msra.mxu0 0.0
        %324 = vmatprep.subr.mxu0 0.0
        %325 = vmatpush1.xpose.msra.mxu0 0.0
        %326 = vmatprep.subr.mxu0 0.0
        %327 = vmatpush1.xpose.msra.mxu0 0.0
        %328 = vmatprep.subr.mxu0 0.0
        %329 = vmatpush1.xpose.msra.mxu0 0.0
        %330 = vmatprep.subr.mxu0 0.0
        %331 = vmatpush1.xpose.msra.mxu0 0.0
        %332 = vmatprep.subr.mxu0 0.0
        %333 = vmatpush1.xpose.msra.mxu0 0.0
        %334 = vmatprep.subr.mxu0 0.0
        %335 = vmatpush1.xpose.msra.mxu0 0.0
        %336 = vmatprep.subr.mxu0 0.0
        %337 = vmatpush1.xpose.msra.mxu0 0.0
        %338 = vmatprep.subr.mxu0 0.0
        %339 = vmatpush1.xpose.msra.mxu0 0.0
        %340 = vmatprep.subr.mxu0 0.0
        %341 = vmatpush1.xpose.msra.mxu0 0.0
        %342 = vmatprep.subr.mxu0 0.0
        %343 = vmatpush1.xpose.msra.mxu0 0.0
        %344 = vmatprep.subr.mxu0 0.0
        %345 = vmatpush1.xpose.msra.mxu0 0.0
        %346 = vmatprep.subr.mxu0 0.0
        %347 = vmatpush1.xpose.msra.mxu0 0.0
        %348 = vmatprep.subr.mxu0 0.0
        %349 = vmatpush1.xpose.msra.mxu0 0.0
        %350 = vmatprep.subr.mxu0 0.0
        %351 = vmatpush1.xpose.msra.mxu0 0.0
        %352 = vmatprep.subr.mxu0 0.0
        %353 = vmatpush1.xpose.msra.mxu0 0.0
        %354 = vmatprep.subr.mxu0 0.0
        %355 = vmatpush1.xpose.msra.mxu0 0.0
        %356 = vmatprep.subr.mxu0 0.0
        %357 = vmatpush1.xpose.msra.mxu0 0.0
        %358 = vmatprep.subr.mxu0 0.0
        %359 = vmatpush1.xpose.msra.mxu0 0.0
        %360 = vmatprep.mubr.f32.mxu0 0.0
        %361 = vmatmul.mubr.f32.gmra.mrb[0].mxu0 %v288
        %v362 = vpop.f32.mrb[0].mxu0
        %v363 = vadd.f32 0.0, %v362
        %v364 = vpop.f32.mrb[0].mxu0
        %365 = vdwg.mxu0
        %v366 = vld [vmem:[%s247] sm:$0x3]
        %vm367 = vnez %v366
        %v368 = vsel %vm367, 16843009, 0
        %v369 = vunpack.c.0.s8 %v368
        %vm370 = vcmp.ne.s32.totalorder %v369, 0
        %v371 = vsel %vm370, -1e+09, %v363
        %vm372 = vcmask 130048
        %v373 = vsel %vm372, %v371, -inf
        %374 = vmax.xlane.f32.xlu0 %v373
        %v375 = vpop.xlane.xlu0 %374
        %v376 = vsub.f32 %v371, %v375
        %v377 = vmul.f32 %v376, 1.442695
        %v378 = vpow.pop %v377
        %v379 = vsel %vm372, %v378, 0.0
        %380 = vadd.xlane.f32.xlu0 %v379
        %v381 = vpop.xlane.xlu0 %380
        %v383 = vsel %vm372, %v378, 0
        %385 = vmatprep.subr.mxu0 0.0
        %386 = vmatpush1.msra.mxu0 %v283
        %387 = vmatprep.subr.mxu0 0.0
        %388 = vmatpush1.msra.mxu0 %v284
        %389 = vmatprep.subr.mxu0 0.0
        %390 = vmatpush1.msra.mxu0 0.0
        %391 = vmatprep.subr.mxu0 0.0
        %392 = vmatpush1.msra.mxu0 0.0
        %393 = vmatprep.subr.mxu0 0.0
        %394 = vmatpush1.msra.mxu0 0.0
        %395 = vmatprep.subr.mxu0 0.0
        %396 = vmatpush1.msra.mxu0 0.0
        %397 = vmatprep.subr.mxu0 0.0
        %398 = vmatpush1.msra.mxu0 0.0
        %399 = vmatprep.subr.mxu0 0.0
        %400 = vmatpush1.msra.mxu0 0.0
        %401 = vmatprep.subr.mxu0 0.0
        %402 = vmatpush1.msra.mxu0 0.0
        %403 = vmatprep.subr.mxu0 0.0
        %404 = vmatpush1.msra.mxu0 0.0
        %405 = vmatprep.subr.mxu0 0.0
        %406 = vmatpush1.msra.mxu0 0.0
        %407 = vmatprep.subr.mxu0 0.0
        %408 = vmatpush1.msra.mxu0 0.0
        %409 = vmatprep.subr.mxu0 0.0
        %410 = vmatpush1.msra.mxu0 0.0
        %411 = vmatprep.subr.mxu0 0.0
        %412 = vmatpush1.msra.mxu0 0.0
        %413 = vmatprep.subr.mxu0 0.0
        %414 = vmatpush1.msra.mxu0 0.0
        %415 = vmatprep.subr.mxu0 0.0
        %416 = vmatpush1.msra.mxu0 0.0
        %417 = vmatprep.subr.mxu0 0.0
        %418 = vmatpush1.msra.mxu0 0.0
        %419 = vmatprep.subr.mxu0 0.0
        %420 = vmatpush1.msra.mxu0 0.0
        %421 = vmatprep.subr.mxu0 0.0
        %422 = vmatpush1.msra.mxu0 0.0
        %423 = vmatprep.subr.mxu0 0.0
        %424 = vmatpush1.msra.mxu0 0.0
        %425 = vmatprep.subr.mxu0 0.0
        %426 = vmatpush1.msra.mxu0 0.0
        %427 = vmatprep.subr.mxu0 0.0
        %428 = vmatpush1.msra.mxu0 0.0
        %429 = vmatprep.subr.mxu0 0.0
        %430 = vmatpush1.msra.mxu0 0.0
        %431 = vmatprep.subr.mxu0 0.0
        %432 = vmatpush1.msra.mxu0 0.0
        %433 = vmatprep.subr.mxu0 0.0
        %434 = vmatpush1.msra.mxu0 0.0
        %435 = vmatprep.subr.mxu0 0.0
        %436 = vmatpush1.msra.mxu0 0.0
        %437 = vmatprep.subr.mxu0 0.0
        %438 = vmatpush1.msra.mxu0 0.0
        %439 = vmatprep.subr.mxu0 0.0
        %440 = vmatpush1.msra.mxu0 0.0
        %441 = vmatprep.subr.mxu0 0.0
        %442 = vmatpush1.msra.mxu0 0.0
        %443 = vmatprep.subr.mxu0 0.0
        %444 = vmatpush1.msra.mxu0 0.0
        %445 = vmatprep.subr.mxu0 0.0
        %446 = vmatpush1.msra.mxu0 0.0
        %447 = vmatprep.subr.mxu0 0.0
        %448 = vmatpush1.msra.mxu0 0.0
        %449 = vmatprep.mubr.f32.mxu0 0.0
        %450 = vmatmul.mubr.f32.gmra.mrb[0].mxu0 %v383
        %v451 = vpop.f32.mrb[0].mxu0
        %v452 = vadd.f32 0.0, %v451
        %v453 = vpop.f32.mrb[0].mxu0
        %454 = vdwg.mxu0
        %v455 = vrcp.pop %v381
        %v456 = vmul.f32 %v452, %v455
        %457 = vst.msk [vmem:[%s279] sm:$0xff] %vm286, %v456
        %s458 = sand.u32 %s127, 1
        %s459 = scalar_lea.sflag [#allocation4], %s458
        %s460 = sand.u32 %s127, 1
        %s461 = smul.addr %s460, 8
        %s462 = scalar_lea.vmem [#allocation8], %s461
        // Predicated region
        $region45: #{_sdpa_call.1} parent=31 // pred_check
          %p463 = pneg %p137
        $region46: #{_sdpa_call.1} parent=31 // pred_check_branch
          %465 = sbr.rel (%p463) target = $region48
        $region47: #{_sdpa_call.1} parent=31 // pred_region
          %s467 = ssub.s32 128, 128
          %468 = vsyncadd %s459, %s467
          %s469 = sadd.s32 %s28, %s27
          %s470 = smul.addr %s469, 128
          %s471 = scalar_lea.hbm %s3, %s470
          %s473 = sshll.u32 %s462, 4
          %s474 = int_to_ptr.vmem [resolvable:$true] %s473
          %476 = dma.vmem_to_hbm [thread:$0]  %s474, 128, %s471, %s459
        $region48: #{_sdpa_call.1} parent=31 // pred_fallthru
          _
      $region32: #{_sdpa_call.1} parent=5 // pred_fallthru
        _
      %p477 = scmp.le.s32.totalorder 2, %s18
      // Predicated region
      $region49: #{_sdpa_call.1} parent=5 // pred_check
        %p478 = pneg %p477
      $region50: #{_sdpa_call.1} parent=5 // pred_check_branch
        %480 = sbr.rel (%p478) target = $region52
      $region51: #{_sdpa_call.1} parent=5 // pred_region
        %s481 = ssub.s32 %s18, 2
        // Predicated region
        $region53: #{_sdpa_call.1} parent=51 // pred_check
          %p482 = pneg %p143
        $region54: #{_sdpa_call.1} parent=51 // pred_check_branch
          %484 = sbr.rel (%p482) target = $region56
        $region55: #{_sdpa_call.1} parent=51 // pred_region
          %s485 = sand.u32 %s128, 1
          %s486 = scalar_lea.sflag [#allocation4], %s485
          %s487 = sand.u32 %s128, 1
          %s488 = smul.addr %s487, 8
          %s489 = scalar_lea.vmem [#allocation8], %s488
          %490 = dma.done %s486, 128
        $region56: #{_sdpa_call.1} parent=51 // pred_fallthru
          _
      $region52: #{_sdpa_call.1} parent=5 // pred_fallthru
        _
    $region6: #{_sdpa_call.1} parent=1 // loop_footer
      %s22 = sadd.s32 1, %s18
    $region7: #{_sdpa_call.1} parent=1 // loop_footer_branch
      %17 = sbr.rel target = $region3
    $region8: #{_sdpa_call.1} parent=1 // loop_exit
      _
    %491 = vsyncpa [#allocation3], 1
    %s492 = scalar_lea.sflag [#allocation3], 1
    %493 = vsyncpa %s492, 1
    %494 = vsyncpa [#allocation6], 1
    %s495 = scalar_lea.sflag [#allocation6], 1
    %496 = vsyncpa %s495, 1
    %497 = vsyncpa [#allocation4], 1
    %s498 = scalar_lea.sflag [#allocation4], 1
    %499 = vsyncpa %s498, 1

</llo_original>
